<compile_context>
chip_gen: v7x
topology: tpu7x:2x2x1
jax: 0.10.0
libtpu: 0.0.40
codegen_flags: <defaults>
</compile_context>

<pallas_src>
import functools

import jax
import jax.numpy as jnp
import numpy as np
from jax.experimental import pallas as pl
from jax.experimental.pallas import tpu as pltpu


# ---------------------------------------------------------------------------
# Stage 1: h = x @ W, fused attention projections f12 = h @ [a1 | a2]
# ---------------------------------------------------------------------------
def gat_project_kernel(x_ref, w_ref, a12_ref, h_ref, f12_ref):
    # NOTE: F_IN (contraction dim) is tiny here, so this MXU pass is underfilled;
    # at production feature sizes keep F_IN a multiple of 128/256.
    h = jnp.dot(x_ref[...], w_ref[...], preferred_element_type=jnp.float32)
    # Single fused (TILE, F_PAD) x (F_PAD, 2) matmul instead of two width-1 dots.
    f12_ref[...] = jnp.dot(h, a12_ref[...], preferred_element_type=jnp.float32)
    # Store h in bf16: halves DMA/VMEM for stage 2 and is the matmul input dtype.
    h_ref[...] = h.astype(jnp.bfloat16)


# ---------------------------------------------------------------------------
# Stage 2: flash-style masked softmax attention + attention @ h + ELU
# ---------------------------------------------------------------------------
def gat_attention_kernel(f1_ref, f2_ref, adj_ref, h_ref, out_ref,
                         m_sc, l_sc, acc_sc, *, alpha):
    kb = pl.program_id(1)

    @pl.when(kb == 0)
    def _init():
        m_sc[...] = jnp.full(m_sc.shape, -jnp.inf, m_sc.dtype)
        l_sc[...] = jnp.zeros(l_sc.shape, l_sc.dtype)
        acc_sc[...] = jnp.zeros(acc_sc.shape, acc_sc.dtype)

    # e[i, j] = leakyrelu(a1.h[i] + a2.h[j]); f2 arrives as a (1, tile_k) row,
    # so this is a pure broadcast add (no XLU transpose inside the kernel).
    e = f1_ref[...] + f2_ref[...]              # (tq,1)+(1,tk) -> (tq,tk)
    e = jnp.maximum(e, alpha * e)              # LeakyReLU, mul+max (alpha<=1)

    # Mask non-edges with -9e15 (PyTorch uses `adj > 0`). Rows with no edges
    # degenerate to uniform attention, exactly like the reference.
    masked = jnp.where(adj_ref[...] > 0, e, jnp.float32(-9e15))

    # Online softmax update (running max / denom / unnormalized accumulator).
    m_prev = m_sc[...]
    m_new = jnp.maximum(m_prev, jnp.max(masked, axis=1, keepdims=True))
    scale = jnp.exp(m_prev - m_new)            # exp(-inf - finite) = 0 on step 0
    p = jnp.exp(masked - m_new)                # UNNORMALIZED probabilities
    l_sc[...] = scale * l_sc[...] + jnp.sum(p, axis=1, keepdims=True)
    # bf16 inputs, f32 accumulation -> native MXU rate. Normalization happens
    # AFTER the matmul (tile_q*f_pad multiplies instead of tile_q*tile_k).
    acc_sc[...] = scale * acc_sc[...] + jnp.dot(
        p.astype(jnp.bfloat16), h_ref[...], preferred_element_type=jnp.float32)
    m_sc[...] = m_new

    # TODO(synk): F.dropout(attention) skipped — deterministic / eval-mode kernel.

    @pl.when(kb == pl.num_programs(1) - 1)
    def _finalize():
        # approx=True -> EUP vrcp slot (otherwise idle).
        h_prime = acc_sc[...] * pl.reciprocal(l_sc[...], approx=True)
        # ELU (concat=True branch). Lane-dense (F_PAD) store.
        out_ref[...] = jnp.where(h_prime > 0, h_prime, jnp.exp(h_prime) - 1.0)


# ---------------------------------------------------------------------------
# Helpers
# ---------------------------------------------------------------------------
def _pick_tile(total, cap, candidates):
    """Largest candidate <= cap that divides `total`; else the full extent."""
    for c in candidates:
        if c <= cap and total % c == 0:
            return c
    return total


def _vmem_capacity_bytes():
    try:
        return int(pltpu.get_tpu_info().vmem_capacity_bytes)
    except Exception:
        return 64 * 1024 * 1024  # conservative (v7x per-TC VMEM)


def _stage2_vmem_estimate(tile_q, tile_k, f_pad, n_k):
    """Rough per-step stage-2 VMEM footprint (bytes)."""
    adj_bufs = 3 if n_k >= 3 else 2
    return (tile_q * f_pad * 4                 # f32 accumulator scratch
            + 2 * tile_q * 4                   # m / l scratch
            + adj_bufs * tile_q * tile_k       # int8 adjacency buffers
            + 2 * tile_k * f_pad * 2           # bf16 h block, double buffered
            + 2 * tile_k * 4 + 2 * tile_q * 4  # f2 row / f1 column
            + 2 * tile_q * f_pad * 4           # f32 output block
            + 4 * tile_q * tile_k * 4)         # logits / exp temporaries


def _spec(block_shape, index_map, buffers=None):
    """BlockSpec with optional pipeline_mode; falls back if unsupported."""
    if buffers is not None:
        try:
            return pl.BlockSpec(block_shape, index_map,
                                pipeline_mode=pl.Buffered(buffers))
        except Exception:
            pass
    return pl.BlockSpec(block_shape, index_map)


# ---------------------------------------------------------------------------
# Wrapper
# ---------------------------------------------------------------------------
def gat_forward(x, W, a, adj, *, alpha=0.2, tile_q=None, tile_k=None):
    N, f_in = x.shape
    f_out = W.shape[1]
    assert 0.0 <= alpha <= 1.0, "maximum-based LeakyReLU requires 0 <= alpha <= 1"

    # Pad the output feature dim to a lane-dense multiple of 128. Zero columns
    # in W/a keep f1/f2/h' exact; ELU(0)=0; sliced off at the end.
    f_pad = max(128, ((f_out + 127) // 128) * 128)
    W_pad = jnp.zeros((f_in, f_pad), jnp.float32).at[:, :f_out].set(W)
    a1 = jnp.zeros((f_pad, 1), jnp.float32).at[:f_out, :].set(a[:f_out, :])
    a2 = jnp.zeros((f_pad, 1), jnp.float32).at[:f_out, :].set(a[f_out:, :])
    a12 = jnp.concatenate([a1, a2], axis=1)            # (f_pad, 2)

    # ---- VMEM budget (generation-aware) -----------------------------------
    vmem_cap = _vmem_capacity_bytes()
    # ~48 MiB on v7x (64 MiB physical), ~96-100 MiB on v5e/v6e (128 MiB).
    vmem_limit = int(min(100 * 1024 * 1024, (vmem_cap * 3) // 4))

    # ---- Tile selection ----------------------------------------------------
    if tile_k is None:
        tile_k = _pick_tile(N, N, (512, 256, 128))
    if tile_q is None:
        # >= 2 row steps so the "parallel" axis shards across v7x's two TCs.
        cap = max(8, N // 2) if N >= 16 else N
        tile_q = _pick_tile(N, cap, (512, 256, 128, 64, 32, 16, 8))
    tile_q = min(tile_q, N)
    tile_k = min(tile_k, N)
    assert tile_q == N or tile_q % 8 == 0, "tile_q must be a multiple of 8"
    assert tile_k == N or tile_k % 128 == 0, "tile_k must be a multiple of 128"
    assert N % tile_q == 0 and N % tile_k == 0, "tiles must divide N"

    # Shrink tile_q against the VMEM budget (leave headroom for the compiler).
    budget = (vmem_limit * 3) // 4
    while (_stage2_vmem_estimate(tile_q, tile_k, f_pad, N // tile_k) > budget
           and tile_q >= 16 and (tile_q // 2) % 8 == 0
           and N % (tile_q // 2) == 0):
        tile_q //= 2

    n_q, n_k = N // tile_q, N // tile_k

    # Adjacency as int8 mask of (adj > 0): 4x less DMA than f32 on the N*N stream.
    adj_i8 = (adj > 0).astype(jnp.int8)

    cparams1 = pltpu.CompilerParams(
        dimension_semantics=("parallel",), vmem_limit_bytes=vmem_limit)
    cparams2 = pltpu.CompilerParams(
        dimension_semantics=("parallel", "arbitrary"), vmem_limit_bytes=vmem_limit)

    # ---- Stage 1: projections ---------------------------------------------
    h_bf16, f12 = pl.pallas_call(
        gat_project_kernel,
        out_shape=(jax.ShapeDtypeStruct((N, f_pad), jnp.bfloat16),
                   jax.ShapeDtypeStruct((N, 2), jnp.float32)),
        grid=(n_q,),
        in_specs=[
            pl.BlockSpec((tile_q, f_in), lambda i: (i, 0)),
            _spec((f_in, f_pad), lambda i: (0, 0), buffers=1),   # grid-invariant
            _spec((f_pad, 2), lambda i: (0, 0), buffers=1),      # grid-invariant
        ],
        out_specs=(
            pl.BlockSpec((tile_q, f_pad), lambda i: (i, 0)),
            pl.BlockSpec((tile_q, 2), lambda i: (i, 0)),
        ),
        compiler_params=cparams1,
        cost_estimate=pl.CostEstimate(
            flops=2 * N * f_in * f_pad + 2 * N * f_pad * 2,
            transcendentals=0,
            bytes_accessed=(N * f_in * 4 + f_in * f_pad * 4 + f_pad * 2 * 4
                            + N * f_pad * 2 + N * 2 * 4),
        ),
    )(x, W_pad, a12)

    # Layout plumbing in the wrapper (XLA): the "source" term stays a column,
    # the "target" term becomes a row so the kernel broadcast needs no transpose.
    f1 = f12[:, 0:1]                                    # (N, 1)
    f2_row = f12[:, 1].reshape(1, N)                    # (1, N)

    # ---- Stage 2: flash-style masked softmax attention + aggregation ------
    # Depth-3 buffering on the dominant int8 adj stream once the key axis tiles.
    adj_buffers = 3 if n_k >= 3 else None
    out_pad = pl.pallas_call(
        functools.partial(gat_attention_kernel, alpha=alpha),
        out_shape=jax.ShapeDtypeStruct((N, f_pad), jnp.float32),
        grid=(n_q, n_k),
        in_specs=[
            pl.BlockSpec((tile_q, 1), lambda i, k: (i, 0)),        # f1 column
            pl.BlockSpec((1, tile_k), lambda i, k: (0, k)),        # f2 row
            _spec((tile_q, tile_k), lambda i, k: (i, k), buffers=adj_buffers),
            pl.BlockSpec((tile_k, f_pad), lambda i, k: (k, 0)),    # h block (bf16)
        ],
        out_specs=pl.BlockSpec((tile_q, f_pad), lambda i, k: (i, 0)),
        scratch_shapes=[
            pltpu.VMEM((tile_q, 1), jnp.float32),       # running max
            pltpu.VMEM((tile_q, 1), jnp.float32),       # running denominator
            pltpu.VMEM((tile_q, f_pad), jnp.float32),   # unnormalized accumulator
        ],
        compiler_params=cparams2,
        cost_estimate=pl.CostEstimate(
            flops=2 * N * N * f_pad + 12 * N * N,
            transcendentals=N * N + N * f_pad + N,
            bytes_accessed=(N * N * 1                       # adj int8
                            + n_q * N * f_pad * 2           # h re-streamed/row-tile
                            + N * f_pad * 4                 # output
                            + N * 4 + n_q * N * 4),         # f1, f2
        ),
    )(f1, f2_row, adj_i8, h_bf16)

    return out_pad[:, :f_out]


# ---------------------------------------------------------------------------
# Pure-JAX f32 reference mirroring the PyTorch forward (eval mode)
# ---------------------------------------------------------------------------
def gat_reference(x, W, a, adj, *, alpha=0.2):
    h = x @ W
    f_out = W.shape[1]
    f1 = h @ a[:f_out, :]
    f2 = h @ a[f_out:, :]
    e = f1 + f2.T
    e = jnp.where(e > 0, e, alpha * e)
    masked = jnp.where(adj > 0, e, -9e15)
    att = jax.nn.softmax(masked, axis=1)
    h_prime = att @ h
    return jnp.where(h_prime > 0, h_prime, jnp.exp(h_prime) - 1.0)


def xavier_uniform(key, shape, gain):
    fan_in, fan_out = shape[0], shape[1]
    bound = gain * np.sqrt(6.0 / (fan_in + fan_out))
    return jax.random.uniform(key, shape, jnp.float32, -bound, bound)


if __name__ == "__main__":
    # Small deterministic problem: N=128 nodes, in_features=16, out_features=32.
    # Default tiling gives a (2, 1) grid: two "parallel" row tiles (megacore-ready)
    # and one key block (the online-softmax / K-tiling path is still exercised).
    N, F_IN, F_OUT = 128, 16, 32
    ALPHA = 0.2  # LeakyReLU negative slope

    key = jax.random.PRNGKey(0)
    k_x, k_w, k_a, k_adj = jax.random.split(key, 4)

    x = jax.random.normal(k_x, (N, F_IN), dtype=jnp.float32)
    W = xavier_uniform(k_w, (F_IN, F_OUT), gain=1.414)
    a = xavier_uniform(k_a, (2 * F_OUT, 1), gain=1.414)
    # Random sparse adjacency plus self-loops (no fully-masked rows); int8 storage.
    adj = ((jax.random.uniform(k_adj, (N, N)) > 0.5)
           | jnp.eye(N, dtype=bool)).astype(jnp.int8)

    out = gat_forward(x, W, a, adj, alpha=ALPHA)
    out = jax.block_until_ready(out)

    ref = gat_reference(x, W.astype(jnp.float32), a, adj, alpha=ALPHA)
    # Tolerance accounts for bf16 (attention, h) in the final MXU op and the
    # approx EUP reciprocal applied to the softmax denominator (~0.5-1% relative).
    np.testing.assert_allclose(np.asarray(out), np.asarray(ref), rtol=2e-2, atol=2e-2)

    print("KERNEL_OK")
</pallas_src>

<mosaic_0001>
module attributes {stable_mosaic.version = 11 : i64} {
  func.func @gat_project_kernel(%arg0: i32, %arg1: memref<64x16xf32, #tpu.memory_space<vmem>>, %arg2: memref<16x128xf32, #tpu.memory_space<vmem>>, %arg3: memref<128x2xf32, #tpu.memory_space<vmem>>, %arg4: memref<64x128xbf16, #tpu.memory_space<vmem>>, %arg5: memref<64x2xf32, #tpu.memory_space<vmem>>) attributes {dimension_semantics = [#tpu.dimension_semantics<parallel>], iteration_bounds = array<i64: 2>, scalar_prefetch = 0 : i64, scratch_operands = 0 : i64, tpu.core_type = #tpu.core_type<tc>, window_params = [{transform_indices = @transform_0, window_bounds = array<i64: 64, 16>}, {pipeline_mode = #tpu.pipeline_mode<synchronous>, transform_indices = @transform_1, window_bounds = array<i64: 16, 128>}, {pipeline_mode = #tpu.pipeline_mode<synchronous>, transform_indices = @transform_2, window_bounds = array<i64: 128, 2>}, {transform_indices = @transform_3, window_bounds = array<i64: 64, 128>}, {transform_indices = @transform_4, window_bounds = array<i64: 64, 2>}]} {
    %c0 = arith.constant 0 : index
    %c0_0 = arith.constant 0 : index
    %0 = vector.load %arg1[%c0, %c0_0] : memref<64x16xf32, #tpu.memory_space<vmem>>, vector<64x16xf32>
    %c0_1 = arith.constant 0 : index
    %c0_2 = arith.constant 0 : index
    %1 = vector.load %arg2[%c0_1, %c0_2] : memref<16x128xf32, #tpu.memory_space<vmem>>, vector<16x128xf32>
    %cst = arith.constant dense<0.000000e+00> : vector<64x128xf32>
    %2 = tpu.matmul %0, %1, %cst {dimension_numbers = #tpu.dot_dimension_numbers<[1], [0], [0], [1], [0, 0, 1, 1], [], []>} : vector<64x16xf32>, vector<16x128xf32>, vector<64x128xf32> -> vector<64x128xf32>
    %c0_3 = arith.constant 0 : index
    %c0_4 = arith.constant 0 : index
    %3 = vector.load %arg3[%c0_3, %c0_4] : memref<128x2xf32, #tpu.memory_space<vmem>>, vector<128x2xf32>
    %cst_5 = arith.constant dense<0.000000e+00> : vector<64x2xf32>
    %4 = tpu.matmul %2, %3, %cst_5 {dimension_numbers = #tpu.dot_dimension_numbers<[1], [0], [0], [1], [0, 0, 1, 1], [], []>} : vector<64x128xf32>, vector<128x2xf32>, vector<64x2xf32> -> vector<64x2xf32>
    %c0_6 = arith.constant 0 : index
    %c0_7 = arith.constant 0 : index
    %5 = vector.load %arg5[%c0_6, %c0_7] : memref<64x2xf32, #tpu.memory_space<vmem>>, vector<64x2xf32>
    tpu.vector_store %arg5[%c0_6, %c0_7], %4 {strides = array<i32>} : memref<64x2xf32, #tpu.memory_space<vmem>>, vector<64x2xf32>,
    %6 = arith.truncf %2 : vector<64x128xf32> to vector<64x128xbf16>
    %c0_8 = arith.constant 0 : index
    %c0_9 = arith.constant 0 : index
    %7 = vector.load %arg4[%c0_8, %c0_9] : memref<64x128xbf16, #tpu.memory_space<vmem>>, vector<64x128xbf16>
    tpu.vector_store %arg4[%c0_8, %c0_9], %6 {strides = array<i32>} : memref<64x128xbf16, #tpu.memory_space<vmem>>, vector<64x128xbf16>,
    return
  }
  func.func @transform_0(%arg0: i32) -> (i32, i32) {
    %c0_i32 = arith.constant 0 : i32
    %c0_i32_0 = arith.constant 0 : i32
    return %arg0, %c0_i32 : i32, i32
  }
  func.func @transform_1(%arg0: i32) -> (i32, i32) {
    %c0_i32 = arith.constant 0 : i32
    %c0_i32_0 = arith.constant 0 : i32
    %c0_i32_1 = arith.constant 0 : i32
    return %c0_i32, %c0_i32_0 : i32, i32
  }
  func.func @transform_2(%arg0: i32) -> (i32, i32) {
    %c0_i32 = arith.constant 0 : i32
    %c0_i32_0 = arith.constant 0 : i32
    %c0_i32_1 = arith.constant 0 : i32
    return %c0_i32, %c0_i32_0 : i32, i32
  }
  func.func @transform_3(%arg0: i32) -> (i32, i32) {
    %c0_i32 = arith.constant 0 : i32
    %c0_i32_0 = arith.constant 0 : i32
    return %arg0, %c0_i32 : i32, i32
  }
  func.func @transform_4(%arg0: i32) -> (i32, i32) {
    %c0_i32 = arith.constant 0 : i32
    %c0_i32_0 = arith.constant 0 : i32
    return %arg0, %c0_i32 : i32, i32
  }
}

</mosaic_0001>

<llo_original>
// kernel: tpu_custom_call.1
$region0: #{tpu_custom_call.1}
  #allocation0 [shape = 'u32[]', space=smem, size = 0x4, offset = 0x4, fixed_abs, tag = 'smem constant byte address 0x4 - core index']
  #allocation1 [shape = 'u32[144,128]{1,0:T(1,128)}', space=vmem, size = 0x12000, scoped, tag = 'internal scratch']
  %s0 = inlined_call_operand.vmem [shape: f32[128,16], index: 0, kind: input, shape index: {}]
  %s1 = inlined_call_operand.vmem [shape: f32[16,128], index: 1, kind: input, shape index: {}]
  %s2 = inlined_call_operand.vmem [shape: f32[128,2], index: 2, kind: input, shape index: {}]
  %s3 = inlined_call_operand.hbm [shape: bf16[128,128], index: 3, kind: output, shape index: {0}]
  %s4 = inlined_call_operand.vmem [shape: f32[128,2], index: 4, kind: output, shape index: {1}]
  %5 = xla_tuple %s3, %s4
  %s6 = sld [smem:[#allocation0]]
  $region53: #{tpu_custom_call.1} parent=0
    _
  %s8 = ssub.s32 1, %s6
  %s9 = scalar_select 0, %s8, %s6
  $region1: #{tpu_custom_call.1} parent=0
    #allocation2 [shape = 'u8[32768]{0}', space=vmem, size = 0x8000, scoped, tag = 'output window, operand 0']
    #allocation3 [shape = 's32[2]{0}', space=sflag, size = 0x8, scoped, tag = 'scoped memory for tpu_custom_call.1']
    %10 = vsyncpa [#allocation3], 0
    %s11 = scalar_lea.sflag [#allocation3], 1
    %12 = vsyncpa %s11, 0
    loop: start=0, step=1, limit=4
    $region2: #{tpu_custom_call.1} parent=1 // loop_pre_header
      _
    $region3: #{tpu_custom_call.1} parent=1 // loop_header
      %s14 = sphi 0, %s18
      %p15 = scmp.ge.s32.totalorder %s14, 4
      %s24 = sphi 0, %s26
      %s27 = sphi 0, %s24
      %s28 = sphi 0, %s27
      %s44 = sphi 0, %s28
      %s48 = sphi 0, %s48
      %s50 = sphi 0, %s48
      %s51 = sphi 0, %s50
      %s65 = sphi 0, %s51
      %s69 = sphi 0, %s69
      %s71 = sphi 0, %s69
      %s72 = sphi 0, %s71
      %s86 = sphi 0, %s72
      %s92 = sphi 0, %s94
      %s95 = sphi 0, %s92
      %s96 = sphi 0, %s95
      %s112 = sphi 0, %s96
      %s118 = sphi 0, %s120
      %s121 = sphi 0, %s118
      %s122 = sphi 0, %s121
      %s138 = sphi 0, %s122
    $region4: #{tpu_custom_call.1} parent=1 // loop_header_branch
      %17 = sbr.rel (%p15) target = $region8
    $region5: #{tpu_custom_call.1} parent=1 // loop_body
      %s19 = ssub.s32 %s14, 1
      %s20 = ssub.s32 %s14, 2
      %s21 = sadd.s32 %s14, 1
      %s22 = ssub.s32 %s14, %s21
      %p23 = scmp.eq.s32.totalorder %s22, 0
      %s25 = sadd.s32 %s24, 1
      %s26 = scalar_select %p23, %s24, %s25
      %p29 = pneg %p23
      %p30 = scmp.eq.s32.totalorder %s14, 1
      %p31 = por %p29, %p30
      %p32 = scmp.ne.s32.totalorder %s24, %s27
      %p33 = scmp.eq.s32.totalorder %s14, 0
      %p34 = por %p32, %p33
      %p35 = scmp.ne.s32.totalorder %s24, %s27
      %p36 = scmp.eq.s32.totalorder %s19, 1
      %p37 = por %p35, %p36
      %p38 = scmp.ne.s32.totalorder %s27, %s28
      %p39 = scmp.eq.s32.totalorder %s19, 0
      %p40 = por %p38, %p39
      %p41 = scmp.ne.s32.totalorder %s27, %s28
      %p42 = scmp.eq.s32.totalorder %s20, 1
      %p43 = por %p41, %p42
      %p45 = scmp.ne.s32.totalorder %s28, %s44
      %p46 = scmp.eq.s32.totalorder %s20, 0
      %p47 = por %p45, %p46
      %s49 = sadd.s32 %s48, 1
      %p52 = scmp.eq.s32.totalorder %s14, 1
      %p53 = scmp.ne.s32.totalorder %s48, %s50
      %p54 = scmp.eq.s32.totalorder %s14, 0
      %p55 = por %p53, %p54
      %p56 = scmp.ne.s32.totalorder %s48, %s50
      %p57 = scmp.eq.s32.totalorder %s19, 1
      %p58 = por %p56, %p57
      %p59 = scmp.ne.s32.totalorder %s50, %s51
      %p60 = scmp.eq.s32.totalorder %s19, 0
      %p61 = por %p59, %p60
      %p62 = scmp.ne.s32.totalorder %s50, %s51
      %p63 = scmp.eq.s32.totalorder %s20, 1
      %p64 = por %p62, %p63
      %p66 = scmp.ne.s32.totalorder %s51, %s65
      %p67 = scmp.eq.s32.totalorder %s20, 0
      %p68 = por %p66, %p67
      %s70 = sadd.s32 %s69, 1
      %p73 = scmp.eq.s32.totalorder %s14, 1
      %p74 = scmp.ne.s32.totalorder %s69, %s71
      %p75 = scmp.eq.s32.totalorder %s14, 0
      %p76 = por %p74, %p75
      %p77 = scmp.ne.s32.totalorder %s69, %s71
      %p78 = scmp.eq.s32.totalorder %s19, 1
      %p79 = por %p77, %p78
      %p80 = scmp.ne.s32.totalorder %s71, %s72
      %p81 = scmp.eq.s32.totalorder %s19, 0
      %p82 = por %p80, %p81
      %p83 = scmp.ne.s32.totalorder %s71, %s72
      %p84 = scmp.eq.s32.totalorder %s20, 1
      %p85 = por %p83, %p84
      %p87 = scmp.ne.s32.totalorder %s72, %s86
      %p88 = scmp.eq.s32.totalorder %s20, 0
      %p89 = por %p87, %p88
      %s90 = ssub.s32 %s14, %s21
      %p91 = scmp.eq.s32.totalorder %s90, 0
      %s93 = sadd.s32 %s92, 1
      %s94 = scalar_select %p91, %s92, %s93
      %p97 = pneg %p91
      %p98 = scmp.eq.s32.totalorder %s14, 1
      %p99 = por %p97, %p98
      %p100 = scmp.ne.s32.totalorder %s92, %s95
      %p101 = scmp.eq.s32.totalorder %s14, 0
      %p102 = por %p100, %p101
      %p103 = scmp.ne.s32.totalorder %s92, %s95
      %p104 = scmp.eq.s32.totalorder %s19, 1
      %p105 = por %p103, %p104
      %p106 = scmp.ne.s32.totalorder %s95, %s96
      %p107 = scmp.eq.s32.totalorder %s19, 0
      %p108 = por %p106, %p107
      %p109 = scmp.ne.s32.totalorder %s95, %s96
      %p110 = scmp.eq.s32.totalorder %s20, 1
      %p111 = por %p109, %p110
      %p113 = scmp.ne.s32.totalorder %s96, %s112
      %p114 = scmp.eq.s32.totalorder %s20, 0
      %p115 = por %p113, %p114
      %s116 = ssub.s32 %s14, %s21
      %p117 = scmp.eq.s32.totalorder %s116, 0
      %s119 = sadd.s32 %s118, 1
      %s120 = scalar_select %p117, %s118, %s119
      %p123 = pneg %p117
      %p124 = scmp.eq.s32.totalorder %s14, 1
      %p125 = por %p123, %p124
      %p126 = scmp.ne.s32.totalorder %s118, %s121
      %p127 = scmp.eq.s32.totalorder %s14, 0
      %p128 = por %p126, %p127
      %p129 = scmp.ne.s32.totalorder %s118, %s121
      %p130 = scmp.eq.s32.totalorder %s19, 1
      %p131 = por %p129, %p130
      %p132 = scmp.ne.s32.totalorder %s121, %s122
      %p133 = scmp.eq.s32.totalorder %s19, 0
      %p134 = por %p132, %p133
      %p135 = scmp.ne.s32.totalorder %s121, %s122
      %p136 = scmp.eq.s32.totalorder %s20, 1
      %p137 = por %p135, %p136
      %p139 = scmp.ne.s32.totalorder %s122, %s138
      %p140 = scmp.eq.s32.totalorder %s20, 0
      %p141 = por %p139, %p140
      %p142 = scmp.le.s32.totalorder 1, %s14
      %p143 = scmp.lt.s32.totalorder %s14, 3
      %p144 = pnand %p142, %p143
      %p145 = pneg %p144
      // Predicated region
      $region9: #{tpu_custom_call.1} parent=5 // pred_check
        _
      $region10: #{tpu_custom_call.1} parent=5 // pred_check_branch
        %147 = sbr.rel (%p144) target = $region12
      $region11: #{tpu_custom_call.1} parent=5 // pred_region
        %s148 = ssub.s32 %s14, 1
        // Predicated region
        $region13: #{tpu_custom_call.1} parent=11 // pred_check
          %p149 = pneg %p61
        $region14: #{tpu_custom_call.1} parent=11 // pred_check_branch
          %151 = sbr.rel (%p149) target = $region16
        $region15: #{tpu_custom_call.1} parent=11 // pred_region
          _
        $region16: #{tpu_custom_call.1} parent=11 // pred_fallthru
          _
        // Predicated region
        $region17: #{tpu_custom_call.1} parent=11 // pred_check
          %p152 = pneg %p82
        $region18: #{tpu_custom_call.1} parent=11 // pred_check_branch
          %154 = sbr.rel (%p152) target = $region20
        $region19: #{tpu_custom_call.1} parent=11 // pred_region
          _
        $region20: #{tpu_custom_call.1} parent=11 // pred_fallthru
          _
      $region12: #{tpu_custom_call.1} parent=5 // pred_fallthru
        _
      %p155 = scmp.lt.s32.totalorder %s14, 2
      // Predicated region
      $region21: #{tpu_custom_call.1} parent=5 // pred_check
        %p156 = pneg %p155
      $region22: #{tpu_custom_call.1} parent=5 // pred_check_branch
        %158 = sbr.rel (%p156) target = $region24
      $region23: #{tpu_custom_call.1} parent=5 // pred_region
        // Predicated region
        $region25: #{tpu_custom_call.1} parent=23 // pred_check
          %p159 = pneg %p34
        $region26: #{tpu_custom_call.1} parent=23 // pred_check_branch
          %161 = sbr.rel (%p159) target = $region28
        $region27: #{tpu_custom_call.1} parent=23 // pred_region
          %s162 = smul.u32 8, %s14
          %p163 = scmp.lt.s32.totalorder %s162, 15
          %s164 = scalar_select %p163, %s162, 15
          %s165 = smul.addr %s164, 8
          %s166 = scalar_lea.vmem %s0, %s165
          %s167 = smul.u32 8, %s14
        $region28: #{tpu_custom_call.1} parent=23 // pred_fallthru
          _
      $region24: #{tpu_custom_call.1} parent=5 // pred_fallthru
        _
      %p168 = scmp.le.s32.totalorder 1, %s14
      %p169 = scmp.lt.s32.totalorder %s14, 3
      %p170 = pnand %p168, %p169
      %p171 = pneg %p170
      // Predicated region
      $region29: #{tpu_custom_call.1} parent=5 // pred_check
        _
      $region30: #{tpu_custom_call.1} parent=5 // pred_check_branch
        %173 = sbr.rel (%p170) target = $region32
      $region31: #{tpu_custom_call.1} parent=5 // pred_region
        %s174 = ssub.s32 %s14, 1
        %s175 = smul.u32 8, %s19
        %p176 = scmp.lt.s32.totalorder %s175, 15
        %s177 = scalar_select %p176, %s175, 15
        %s178 = smul.addr %s177, 8
        %s179 = scalar_lea.vmem %s0, %s178
        %p180 = pneg %p40
        %p181 = pneg %p37
        %p182 = pneg %p61
        %p183 = pneg %p58
        %p184 = pneg %p82
        %p185 = pneg %p79
        %p186 = pneg %p108
        %p187 = pneg %p105
        %s188 = sand.u32 %s95, 1
        %s189 = scalar_lea.sflag [#allocation3], %s188
        %s190 = sand.u32 %s95, 1
        %s191 = smul.addr %s190, 32
        %s192 = scalar_lea.vmem [#allocation2], %s191
        %p193 = pneg %p134
        %p194 = pneg %p131
        %s195 = smul.u32 8, %s19
        %p196 = scmp.lt.s32.totalorder %s195, 15
        %s197 = scalar_select %p196, %s195, 15
        %s198 = smul.addr %s197, 8
        %s199 = scalar_lea.vmem %s4, %s198
        %s200 = smul.u32 8, %s19
        %p201 = scmp.lt.s32.totalorder %s200, 15
        %s202 = scalar_select %p201, %s200, 15
        %s203 = smul.addr %s202, 8
        %s204 = scalar_lea.vmem %s0, %s203
        %s205 = smul.u32 8, %s19
        %s206 = smul.u32 8, %s19
        %s207 = smul.u32 8, %s19
        %p208 = scmp.lt.s32.totalorder %s207, 15
        %s209 = scalar_select %p208, %s207, 15
        %s210 = smul.addr %s209, 8
        %s211 = scalar_lea.vmem %s4, %s210
        %s212 = smul.u32 8, %s19
        %v213 = vld [vmem:[%s204] sm:$0xff]
        %v214 = vld [vmem:[%s204 + $0x8] sm:$0xff]
        %v215 = vld [vmem:[%s204 + $0x10] sm:$0xff]
        %v216 = vld [vmem:[%s204 + $0x18] sm:$0xff]
        %v217 = vld [vmem:[%s204 + $0x20] sm:$0xff]
        %v218 = vld [vmem:[%s204 + $0x28] sm:$0xff]
        %v219 = vld [vmem:[%s204 + $0x30] sm:$0xff]
        %v220 = vld [vmem:[%s204 + $0x38] sm:$0xff]
        %v221 = vld [vmem:[%s1] sm:$0xff]
        %v222 = vld [vmem:[%s1 + $0x8] sm:$0xff]
        %vm223 = vcmask 130048
        %v225 = vsel %vm223, %v213, 0
        %v228 = vsel %vm223, %v214, 0
        %v231 = vsel %vm223, %v215, 0
        %v234 = vsel %vm223, %v216, 0
        %v237 = vsel %vm223, %v217, 0
        %v240 = vsel %vm223, %v218, 0
        %v243 = vsel %vm223, %v219, 0
        %v246 = vsel %vm223, %v220, 0
        %248 = vmatprep.subr.mxu0 0.0
        %249 = vmatpush1.msra.mxu0 %v221
        %250 = vmatprep.subr.mxu0 0.0
        %251 = vmatpush1.msra.mxu0 %v222
        %252 = vmatprep.subr.mxu0 0.0
        %253 = vmatpush1.msra.mxu0 0.0
        %254 = vmatprep.subr.mxu0 0.0
        %255 = vmatpush1.msra.mxu0 0.0
        %256 = vmatprep.subr.mxu0 0.0
        %257 = vmatpush1.msra.mxu0 0.0
        %258 = vmatprep.subr.mxu0 0.0
        %259 = vmatpush1.msra.mxu0 0.0
        %260 = vmatprep.subr.mxu0 0.0
        %261 = vmatpush1.msra.mxu0 0.0
        %262 = vmatprep.subr.mxu0 0.0
        %263 = vmatpush1.msra.mxu0 0.0
        %264 = vmatprep.subr.mxu0 0.0
        %265 = vmatpush1.msra.mxu0 0.0
        %266 = vmatprep.subr.mxu0 0.0
        %267 = vmatpush1.msra.mxu0 0.0
        %268 = vmatprep.subr.mxu0 0.0
        %269 = vmatpush1.msra.mxu0 0.0
        %270 = vmatprep.subr.mxu0 0.0
        %271 = vmatpush1.msra.mxu0 0.0
        %272 = vmatprep.subr.mxu0 0.0
        %273 = vmatpush1.msra.mxu0 0.0
        %274 = vmatprep.subr.mxu0 0.0
        %275 = vmatpush1.msra.mxu0 0.0
        %276 = vmatprep.subr.mxu0 0.0
        %277 = vmatpush1.msra.mxu0 0.0
        %278 = vmatprep.subr.mxu0 0.0
        %279 = vmatpush1.msra.mxu0 0.0
        %280 = vmatprep.subr.mxu0 0.0
        %281 = vmatpush1.msra.mxu0 0.0
        %282 = vmatprep.subr.mxu0 0.0
        %283 = vmatpush1.msra.mxu0 0.0
        %284 = vmatprep.subr.mxu0 0.0
        %285 = vmatpush1.msra.mxu0 0.0
        %286 = vmatprep.subr.mxu0 0.0
        %287 = vmatpush1.msra.mxu0 0.0
        %288 = vmatprep.subr.mxu0 0.0
        %289 = vmatpush1.msra.mxu0 0.0
        %290 = vmatprep.subr.mxu0 0.0
        %291 = vmatpush1.msra.mxu0 0.0
        %292 = vmatprep.subr.mxu0 0.0
        %293 = vmatpush1.msra.mxu0 0.0
        %294 = vmatprep.subr.mxu0 0.0
        %295 = vmatpush1.msra.mxu0 0.0
        %296 = vmatprep.subr.mxu0 0.0
        %297 = vmatpush1.msra.mxu0 0.0
        %298 = vmatprep.subr.mxu0 0.0
        %299 = vmatpush1.msra.mxu0 0.0
        %300 = vmatprep.subr.mxu0 0.0
        %301 = vmatpush1.msra.mxu0 0.0
        %302 = vmatprep.subr.mxu0 0.0
        %303 = vmatpush1.msra.mxu0 0.0
        %304 = vmatprep.subr.mxu0 0.0
        %305 = vmatpush1.msra.mxu0 0.0
        %306 = vmatprep.subr.mxu0 0.0
        %307 = vmatpush1.msra.mxu0 0.0
        %308 = vmatprep.subr.mxu0 0.0
        %309 = vmatpush1.msra.mxu0 0.0
        %310 = vmatprep.subr.mxu0 0.0
        %311 = vmatpush1.msra.mxu0 0.0
        %312 = vmatprep.mubr.f32.mxu0 0.0
        %313 = vmatmul.mubr.f32.gmra.mrb[0].mxu0 %v225
        %v314 = vpop.f32.mrb[0].mxu0
        %v315 = vadd.f32 0.0, %v314
        %v316 = vpop.f32.mrb[0].mxu0
        %317 = vmatprep.mubr.f32.mxu0 0.0
        %318 = vmatmul.mubr.f32.gmra.mrb[0].mxu0 %v228
        %v319 = vpop.f32.mrb[0].mxu0
        %v320 = vadd.f32 0.0, %v319
        %v321 = vpop.f32.mrb[0].mxu0
        %322 = vmatprep.mubr.f32.mxu0 0.0
        %323 = vmatmul.mubr.f32.gmra.mrb[0].mxu0 %v231
        %v324 = vpop.f32.mrb[0].mxu0
        %v325 = vadd.f32 0.0, %v324
        %v326 = vpop.f32.mrb[0].mxu0
        %327 = vmatprep.mubr.f32.mxu0 0.0
        %328 = vmatmul.mubr.f32.gmra.mrb[0].mxu0 %v234
        %v329 = vpop.f32.mrb[0].mxu0
        %v330 = vadd.f32 0.0, %v329
        %v331 = vpop.f32.mrb[0].mxu0
        %332 = vmatprep.mubr.f32.mxu0 0.0
        %333 = vmatmul.mubr.f32.gmra.mrb[0].mxu0 %v237
        %v334 = vpop.f32.mrb[0].mxu0
        %v335 = vadd.f32 0.0, %v334
        %v336 = vpop.f32.mrb[0].mxu0
        %337 = vmatprep.mubr.f32.mxu0 0.0
        %338 = vmatmul.mubr.f32.gmra.mrb[0].mxu0 %v240
        %v339 = vpop.f32.mrb[0].mxu0
        %v340 = vadd.f32 0.0, %v339
        %v341 = vpop.f32.mrb[0].mxu0
        %342 = vmatprep.mubr.f32.mxu0 0.0
        %343 = vmatmul.mubr.f32.gmra.mrb[0].mxu0 %v243
        %v344 = vpop.f32.mrb[0].mxu0
        %v345 = vadd.f32 0.0, %v344
        %v346 = vpop.f32.mrb[0].mxu0
        %347 = vmatprep.mubr.f32.mxu0 0.0
        %348 = vmatmul.mubr.f32.gmra.mrb[0].mxu0 %v246
        %v349 = vpop.f32.mrb[0].mxu0
        %v350 = vadd.f32 0.0, %v349
        %v351 = vpop.f32.mrb[0].mxu0
        %352 = vdwg.mxu0
        %v353 = vld [vmem:[%s2] sm:$0xff]
        %v354 = vld [vmem:[%s2 + $0x8] sm:$0xff]
        %v355 = vld [vmem:[%s2 + $0x10] sm:$0xff]
        %v356 = vld [vmem:[%s2 + $0x18] sm:$0xff]
        %v357 = vld [vmem:[%s2 + $0x20] sm:$0xff]
        %v358 = vld [vmem:[%s2 + $0x28] sm:$0xff]
        %v359 = vld [vmem:[%s2 + $0x30] sm:$0xff]
        %v360 = vld [vmem:[%s2 + $0x38] sm:$0xff]
        %v361 = vld [vmem:[%s2 + $0x40] sm:$0xff]
        %v362 = vld [vmem:[%s2 + $0x48] sm:$0xff]
        %v363 = vld [vmem:[%s2 + $0x50] sm:$0xff]
        %v364 = vld [vmem:[%s2 + $0x58] sm:$0xff]
        %v365 = vld [vmem:[%s2 + $0x60] sm:$0xff]
        %v366 = vld [vmem:[%s2 + $0x68] sm:$0xff]
        %v367 = vld [vmem:[%s2 + $0x70] sm:$0xff]
        %v368 = vld [vmem:[%s2 + $0x78] sm:$0xff]
        %369 = vmatprep.subr.mxu0 0.0
        %370 = vmatpush1.msra.mxu0 %v353
        %371 = vmatprep.subr.mxu0 0.0
        %372 = vmatpush1.msra.mxu0 %v354
        %373 = vmatprep.subr.mxu0 0.0
        %374 = vmatpush1.msra.mxu0 %v355
        %375 = vmatprep.subr.mxu0 0.0
        %376 = vmatpush1.msra.mxu0 %v356
        %377 = vmatprep.subr.mxu0 0.0
        %378 = vmatpush1.msra.mxu0 %v357
        %379 = vmatprep.subr.mxu0 0.0
        %380 = vmatpush1.msra.mxu0 %v358
        %381 = vmatprep.subr.mxu0 0.0
        %382 = vmatpush1.msra.mxu0 %v359
        %383 = vmatprep.subr.mxu0 0.0
        %384 = vmatpush1.msra.mxu0 %v360
        %385 = vmatprep.subr.mxu0 0.0
        %386 = vmatpush1.msra.mxu0 %v361
        %387 = vmatprep.subr.mxu0 0.0
        %388 = vmatpush1.msra.mxu0 %v362
        %389 = vmatprep.subr.mxu0 0.0
        %390 = vmatpush1.msra.mxu0 %v363
        %391 = vmatprep.subr.mxu0 0.0
        %392 = vmatpush1.msra.mxu0 %v364
        %393 = vmatprep.subr.mxu0 0.0
        %394 = vmatpush1.msra.mxu0 %v365
        %395 = vmatprep.subr.mxu0 0.0
        %396 = vmatpush1.msra.mxu0 %v366
        %397 = vmatprep.subr.mxu0 0.0
        %398 = vmatpush1.msra.mxu0 %v367
        %399 = vmatprep.subr.mxu0 0.0
        %400 = vmatpush1.msra.mxu0 %v368
        %401 = vmatprep.subr.mxu0 0.0
        %402 = vmatpush1.msra.mxu0 0.0
        %403 = vmatprep.subr.mxu0 0.0
        %404 = vmatpush1.msra.mxu0 0.0
        %405 = vmatprep.subr.mxu0 0.0
        %406 = vmatpush1.msra.mxu0 0.0
        %407 = vmatprep.subr.mxu0 0.0
        %408 = vmatpush1.msra.mxu0 0.0
        %409 = vmatprep.subr.mxu0 0.0
        %410 = vmatpush1.msra.mxu0 0.0
        %411 = vmatprep.subr.mxu0 0.0
        %412 = vmatpush1.msra.mxu0 0.0
        %413 = vmatprep.subr.mxu0 0.0
        %414 = vmatpush1.msra.mxu0 0.0
        %415 = vmatprep.subr.mxu0 0.0
        %416 = vmatpush1.msra.mxu0 0.0
        %417 = vmatprep.subr.mxu0 0.0
        %418 = vmatpush1.msra.mxu0 0.0
        %419 = vmatprep.subr.mxu0 0.0
        %420 = vmatpush1.msra.mxu0 0.0
        %421 = vmatprep.subr.mxu0 0.0
        %422 = vmatpush1.msra.mxu0 0.0
        %423 = vmatprep.subr.mxu0 0.0
        %424 = vmatpush1.msra.mxu0 0.0
        %425 = vmatprep.subr.mxu0 0.0
        %426 = vmatpush1.msra.mxu0 0.0
        %427 = vmatprep.subr.mxu0 0.0
        %428 = vmatpush1.msra.mxu0 0.0
        %429 = vmatprep.subr.mxu0 0.0
        %430 = vmatpush1.msra.mxu0 0.0
        %431 = vmatprep.subr.mxu0 0.0
        %432 = vmatpush1.msra.mxu0 0.0
        %433 = vmatprep.mubr.f32.mxu0 0.0
        %434 = vmatmul.mubr.f32.gmra.mrb[0].mxu0 %v315
        %v435 = vpop.f32.mrb[0].mxu0
        %v436 = vadd.f32 0.0, %v435
        %v437 = vpop.f32.mrb[0].mxu0
        %438 = vmatprep.mubr.f32.mxu0 0.0
        %439 = vmatmul.mubr.f32.gmra.mrb[0].mxu0 %v320
        %v440 = vpop.f32.mrb[0].mxu0
        %v441 = vadd.f32 0.0, %v440
        %v442 = vpop.f32.mrb[0].mxu0
        %443 = vmatprep.mubr.f32.mxu0 0.0
        %444 = vmatmul.mubr.f32.gmra.mrb[0].mxu0 %v325
        %v445 = vpop.f32.mrb[0].mxu0
        %v446 = vadd.f32 0.0, %v445
        %v447 = vpop.f32.mrb[0].mxu0
        %448 = vmatprep.mubr.f32.mxu0 0.0
        %449 = vmatmul.mubr.f32.gmra.mrb[0].mxu0 %v330
        %v450 = vpop.f32.mrb[0].mxu0
        %v451 = vadd.f32 0.0, %v450
        %v452 = vpop.f32.mrb[0].mxu0
        %453 = vmatprep.mubr.f32.mxu0 0.0
        %454 = vmatmul.mubr.f32.gmra.mrb[0].mxu0 %v335
        %v455 = vpop.f32.mrb[0].mxu0
        %v456 = vadd.f32 0.0, %v455
        %v457 = vpop.f32.mrb[0].mxu0
        %458 = vmatprep.mubr.f32.mxu0 0.0
        %459 = vmatmul.mubr.f32.gmra.mrb[0].mxu0 %v340
        %v460 = vpop.f32.mrb[0].mxu0
        %v461 = vadd.f32 0.0, %v460
        %v462 = vpop.f32.mrb[0].mxu0
        %463 = vmatprep.mubr.f32.mxu0 0.0
        %464 = vmatmul.mubr.f32.gmra.mrb[0].mxu0 %v345
        %v465 = vpop.f32.mrb[0].mxu0
        %v466 = vadd.f32 0.0, %v465
        %v467 = vpop.f32.mrb[0].mxu0
        %468 = vmatprep.mubr.f32.mxu0 0.0
        %469 = vmatmul.mubr.f32.gmra.mrb[0].mxu0 %v350
        %v470 = vpop.f32.mrb[0].mxu0
        %v471 = vadd.f32 0.0, %v470
        %v472 = vpop.f32.mrb[0].mxu0
        %473 = vdwg.mxu0
        %vm474 = vcmask 15360
        %475 = vst.msk [vmem:[%s211] sm:$0xff] %vm474, %v436
        %476 = vst.msk [vmem:[%s211 + $0x8] sm:$0xff] %vm474, %v441
        %477 = vst.msk [vmem:[%s211 + $0x10] sm:$0xff] %vm474, %v446
        %478 = vst.msk [vmem:[%s211 + $0x18] sm:$0xff] %vm474, %v451
        %479 = vst.msk [vmem:[%s211 + $0x20] sm:$0xff] %vm474, %v456
        %480 = vst.msk [vmem:[%s211 + $0x28] sm:$0xff] %vm474, %v461
        %481 = vst.msk [vmem:[%s211 + $0x30] sm:$0xff] %vm474, %v466
        %482 = vst.msk [vmem:[%s211 + $0x38] sm:$0xff] %vm474, %v471
        %v483 = vpack.c.bf16 %v320, %v315
        %v484 = vpack.c.bf16 %v330, %v325
        %v485 = vpack.c.bf16 %v340, %v335
        %v486 = vpack.c.bf16 %v350, %v345
        %v491 = vunpack.c.l.b16 %v483
        %v492 = vunpack.c.h.b16 %v483
        %v493 = vunpack.c.l.b16 %v484
        %v494 = vunpack.c.h.b16 %v484
        %v495 = vunpack.c.l.b16 %v485
        %v496 = vunpack.c.h.b16 %v485
        %v497 = vunpack.c.l.b16 %v486
        %v498 = vunpack.c.h.b16 %v486
        %v499 = vpack.c.b16 %v491, %v491
        %v500 = vpack.c.b16 %v492, %v492
        %v501 = vpack.c.b16 %v493, %v493
        %v502 = vpack.c.b16 %v494, %v494
        %v503 = vpack.c.b16 %v495, %v495
        %v504 = vpack.c.b16 %v496, %v496
        %v505 = vpack.c.b16 %v497, %v497
        %v506 = vpack.c.b16 %v498, %v498
        %515 = vst [vmem:[%s192] sm:$0xf] %v499
        %516 = vst [vmem:[%s192 + $0x4] sm:$0xf] %v500
        %517 = vst [vmem:[%s192 + $0x8] sm:$0xf] %v501
        %518 = vst [vmem:[%s192 + $0xc] sm:$0xf] %v502
        %519 = vst [vmem:[%s192 + $0x10] sm:$0xf] %v503
        %520 = vst [vmem:[%s192 + $0x14] sm:$0xf] %v504
        %521 = vst [vmem:[%s192 + $0x18] sm:$0xf] %v505
        %522 = vst [vmem:[%s192 + $0x1c] sm:$0xf] %v506
        %s523 = sand.u32 %s95, 1
        %s524 = scalar_lea.sflag [#allocation3], %s523
        %s525 = sand.u32 %s95, 1
        %s526 = smul.addr %s525, 32
        %s527 = scalar_lea.vmem [#allocation2], %s526
        %s528 = smul.u32 8, %s19
        %p529 = scmp.lt.s32.totalorder %s528, 15
        %s530 = scalar_select %p529, %s528, 15
        %s531 = smul.addr %s530, 8
        %s532 = scalar_lea.vmem %s4, %s531
        // Predicated region
        $region33: #{tpu_custom_call.1} parent=31 // pred_check
          %p533 = pneg %p105
        $region34: #{tpu_custom_call.1} parent=31 // pred_check_branch
          %535 = sbr.rel (%p533) target = $region36
        $region35: #{tpu_custom_call.1} parent=31 // pred_region
          %s536 = smul.u32 8, %s19
          %s538 = ssub.s32 512, 512
          %539 = vsyncadd %s524, %s538
          %s540 = smul.addr %s536, 64
          %s541 = scalar_lea.hbm %s3, %s540
          %s542 = sshll.u32 %s527, 4
          %s543 = int_to_ptr.vmem [resolvable:$true] %s542
          %548 = dma.vmem_to_hbm [thread:$0]  %s543, 512, %s541, %s524, 64, 64, 4
        $region36: #{tpu_custom_call.1} parent=31 // pred_fallthru
          _
        // Predicated region
        $region37: #{tpu_custom_call.1} parent=31 // pred_check
          %p549 = pneg %p131
        $region38: #{tpu_custom_call.1} parent=31 // pred_check_branch
          %551 = sbr.rel (%p549) target = $region40
        $region39: #{tpu_custom_call.1} parent=31 // pred_region
          %s552 = smul.u32 8, %s19
        $region40: #{tpu_custom_call.1} parent=31 // pred_fallthru
          _
      $region32: #{tpu_custom_call.1} parent=5 // pred_fallthru
        _
      %p553 = scmp.le.s32.totalorder 2, %s14
      // Predicated region
      $region41: #{tpu_custom_call.1} parent=5 // pred_check
        %p554 = pneg %p553
      $region42: #{tpu_custom_call.1} parent=5 // pred_check_branch
        %556 = sbr.rel (%p554) target = $region44
      $region43: #{tpu_custom_call.1} parent=5 // pred_region
        %s557 = ssub.s32 %s14, 2
        // Predicated region
        $region45: #{tpu_custom_call.1} parent=43 // pred_check
          %p558 = pneg %p111
        $region46: #{tpu_custom_call.1} parent=43 // pred_check_branch
          %560 = sbr.rel (%p558) target = $region48
        $region47: #{tpu_custom_call.1} parent=43 // pred_region
          %s561 = sand.u32 %s96, 1
          %s562 = scalar_lea.sflag [#allocation3], %s561
          %s563 = sand.u32 %s96, 1
          %s564 = smul.addr %s563, 32
          %s565 = scalar_lea.vmem [#allocation2], %s564
          %566 = dma.done %s562, 512
        $region48: #{tpu_custom_call.1} parent=43 // pred_fallthru
          _
        // Predicated region
        $region49: #{tpu_custom_call.1} parent=43 // pred_check
          %p567 = pneg %p137
        $region50: #{tpu_custom_call.1} parent=43 // pred_check_branch
          %569 = sbr.rel (%p567) target = $region52
        $region51: #{tpu_custom_call.1} parent=43 // pred_region
          %s570 = smul.u32 8, %s20
          %p571 = scmp.lt.s32.totalorder %s570, 15
          %s572 = scalar_select %p571, %s570, 15
          %s573 = smul.addr %s572, 8
          %s574 = scalar_lea.vmem %s4, %s573
        $region52: #{tpu_custom_call.1} parent=43 // pred_fallthru
          _
      $region44: #{tpu_custom_call.1} parent=5 // pred_fallthru
        _
    $region6: #{tpu_custom_call.1} parent=1 // loop_footer
      %s18 = sadd.s32 1, %s14
    $region7: #{tpu_custom_call.1} parent=1 // loop_footer_branch
      %13 = sbr.rel target = $region3
    $region8: #{tpu_custom_call.1} parent=1 // loop_exit
      _
    %575 = vsyncpa [#allocation3], 1
    %s576 = scalar_lea.sflag [#allocation3], 1
    %577 = vsyncpa %s576, 1

</llo_original>
